<compile_context>
chip_gen: v7x
topology: tpu7x:2x2x1
jax: 0.10.0
libtpu: 0.0.40
codegen_flags: <defaults>
</compile_context>

<pallas_src>
import jax
import jax.numpy as jnp
from jax.experimental import pallas as pl
from jax.experimental.pallas import tpu as pltpu


def _identity2_kernel(x_ref, s_ref, y_ref, t_ref):
    # Pure pass-through copies; whole (tiny) arrays are single VMEM blocks.
    y_ref[...] = x_ref[...]
    t_ref[...] = s_ref[...]


def _decode_identity(x, state):
    """Demo only: stage (x, state) through one aliased, gridless Pallas call.

    Note: input_output_aliases donates the input buffers — callers must not
    reuse the exact arrays they pass in afterwards (pass copies if needed).
    """
    y, new_state = pl.pallas_call(
        _identity2_kernel,
        out_shape=(
            jax.ShapeDtypeStruct(x.shape, x.dtype),
            jax.ShapeDtypeStruct(state.shape, state.dtype),
        ),
        in_specs=[
            pl.BlockSpec(memory_space=pltpu.MemorySpace.VMEM),
            pl.BlockSpec(memory_space=pltpu.MemorySpace.VMEM),
        ],
        out_specs=(
            pl.BlockSpec(memory_space=pltpu.MemorySpace.VMEM),
            pl.BlockSpec(memory_space=pltpu.MemorySpace.VMEM),
        ),
        # Outputs alias the input HBM buffers: no extra allocation/writeback,
        # and no dtype casts anywhere (each tensor keeps its own dtype).
        input_output_aliases={0: 0, 1: 1},
    )(x, state)
    return y, new_state


def decode_forward(x, state):
    """Exact semantic match of DeCode.forward: the body is `pass` -> None.

    No device work is launched here (fastest correct no-op).
    """
    return None


if __name__ == "__main__":
    key = jax.random.PRNGKey(0)
    kx, ks = jax.random.split(key)

    batch, seq_len, hidden = 2, 8, 32
    x = jax.random.normal(kx, (batch, seq_len, hidden), dtype=jnp.float32)
    state = jax.random.normal(ks, (batch, hidden), dtype=jnp.float32)

    # Exact reference semantics: forward returns None and launches nothing.
    out = decode_forward(x, state)
    assert out is None

    # Coverage: run the (off-path) Pallas identity kernel once.  Pass copies
    # because the kernel aliases (donates) its input buffers.
    y, new_state = _decode_identity(jnp.copy(x), jnp.copy(state))
    jax.block_until_ready((y, new_state))

    # Sanity: identity pass-through is bit-exact (no dtype round-trip).
    assert jnp.array_equal(y, x)
    assert jnp.array_equal(new_state, state)

    print("KERNEL_OK")
</pallas_src>

<mosaic_0001>
module attributes {stable_mosaic.version = 11 : i64} {
  func.func @_identity2_kernel(%arg0: memref<2x8x32xf32, #tpu.memory_space<vmem>>, %arg1: memref<2x32xf32, #tpu.memory_space<vmem>>, %arg2: memref<2x8x32xf32, #tpu.memory_space<vmem>>, %arg3: memref<2x32xf32, #tpu.memory_space<vmem>>) attributes {dimension_semantics = [], scalar_prefetch = 0 : i64, scratch_operands = 0 : i64, tpu.core_type = #tpu.core_type<tc>} {
    %c0 = arith.constant 0 : index
    %c0_0 = arith.constant 0 : index
    %c0_1 = arith.constant 0 : index
    %0 = vector.load %arg0[%c0, %c0_0, %c0_1] : memref<2x8x32xf32, #tpu.memory_space<vmem>>, vector<2x8x32xf32>
    %c0_2 = arith.constant 0 : index
    %c0_3 = arith.constant 0 : index
    %c0_4 = arith.constant 0 : index
    %1 = vector.load %arg2[%c0_2, %c0_3, %c0_4] : memref<2x8x32xf32, #tpu.memory_space<vmem>>, vector<2x8x32xf32>
    tpu.vector_store %arg2[%c0_2, %c0_3, %c0_4], %0 {strides = array<i32>} : memref<2x8x32xf32, #tpu.memory_space<vmem>>, vector<2x8x32xf32>,
    %c0_5 = arith.constant 0 : index
    %c0_6 = arith.constant 0 : index
    %2 = vector.load %arg1[%c0_5, %c0_6] : memref<2x32xf32, #tpu.memory_space<vmem>>, vector<2x32xf32>
    %c0_7 = arith.constant 0 : index
    %c0_8 = arith.constant 0 : index
    %3 = vector.load %arg3[%c0_7, %c0_8] : memref<2x32xf32, #tpu.memory_space<vmem>>, vector<2x32xf32>
    tpu.vector_store %arg3[%c0_7, %c0_8], %2 {strides = array<i32>} : memref<2x32xf32, #tpu.memory_space<vmem>>, vector<2x32xf32>,
    return
  }
}

</mosaic_0001>

<llo_original>
// kernel: tpu_custom_call.1
$region0: #{tpu_custom_call.1}
  #allocation0 [shape = 'u32[]', space=smem, size = 0x4, offset = 0x4, fixed_abs, tag = 'smem constant byte address 0x4 - core index']
  #allocation1 [shape = 'u32[144,128]{1,0:T(1,128)}', space=vmem, size = 0x12000, scoped, tag = 'internal scratch']
  %s0 = inlined_call_operand.hbm [shape: f32[2,8,32], index: 0, kind: input, shape index: {}, may-alias: {0,2}]
  %s1 = inlined_call_operand.hbm [shape: f32[2,32], index: 1, kind: input, shape index: {}, may-alias: {1,3}]
  %s2 = inlined_call_operand.hbm [shape: f32[2,8,32], index: 2, kind: output, shape index: {0}, may-alias: {0,2}]
  %s3 = inlined_call_operand.hbm [shape: f32[2,32], index: 3, kind: output, shape index: {1}, may-alias: {1,3}]
  %4 = xla_tuple %s2, %s3
  %s5 = sld [smem:[#allocation0]]
  $region34: #{tpu_custom_call.1} parent=0
    _
  %s7 = ssub.s32 1, %s5
  %s8 = scalar_select 0, %s7, %s5
  $region1: #{tpu_custom_call.1} parent=0
    #allocation2 [shape = 'u8[8192]{0}', space=vmem, size = 0x2000, scoped, tag = 'input window, operand 0, single buffered']
    #allocation3 [shape = 's32[1]{0}', space=sflag, size = 0x4, scoped, tag = 'scoped memory for tpu_custom_call.1']
    #allocation4 [shape = 's32[1]{0}', space=sflag, size = 0x4, scoped, tag = 'scoped memory for tpu_custom_call.1']
    #allocation5 [shape = 'u8[1024]{0}', space=vmem, size = 0x400, scoped, tag = 'input window, operand 1, single buffered']
    #allocation6 [shape = 's32[1]{0}', space=sflag, size = 0x4, scoped, tag = 'scoped memory for tpu_custom_call.1']
    #allocation7 [shape = 'u8[8192]{0}', space=vmem, size = 0x2000, scoped, tag = 'output window, operand 0, single buffered']
    #allocation8 [shape = 'u8[1024]{0}', space=vmem, size = 0x400, scoped, tag = 'output window, operand 1, single buffered']
    #allocation9 [shape = 's32[1]{0}', space=sflag, size = 0x4, scoped, tag = 'scoped memory for tpu_custom_call.1']
    %9 = vsyncpa [#allocation3], 0
    %10 = vsyncpa [#allocation6], 0
    %11 = vsyncpa [#allocation4], 0
    %12 = vsyncpa [#allocation9], 0
    // Predicated region
    $region2: #{tpu_custom_call.1} parent=1 // pred_check
      _
    $region3: #{tpu_custom_call.1} parent=1 // pred_check_branch
      %14 = sbr.rel (0) target = $region5
    $region4: #{tpu_custom_call.1} parent=1 // pred_region
      %s16 = ssub.s32 256, 256
      %17 = vsyncadd [#allocation3], %s16
      %s18 = sshll.u32 [#allocation2], 4
      %s19 = int_to_ptr.vmem [resolvable:$true] %s18
      %24 = dma.hbm_to_vmem [thread:$0]  %s0, 256, %s19, [#allocation3], 128, 128, 8
    $region5: #{tpu_custom_call.1} parent=1 // pred_fallthru
      _
    // Predicated region
    $region6: #{tpu_custom_call.1} parent=1 // pred_check
      _
    $region7: #{tpu_custom_call.1} parent=1 // pred_check_branch
      %26 = sbr.rel (0) target = $region9
    $region8: #{tpu_custom_call.1} parent=1 // pred_region
      %s28 = ssub.s32 32, 32
      %29 = vsyncadd [#allocation6], %s28
      %s31 = sshll.u32 [#allocation5], 4
      %s32 = int_to_ptr.vmem [resolvable:$true] %s31
      %34 = dma.hbm_to_vmem [thread:$0]  %s1, 32, %s32, [#allocation6]
    $region9: #{tpu_custom_call.1} parent=1 // pred_fallthru
      _
    // Predicated region
    $region10: #{tpu_custom_call.1} parent=1 // pred_check
      _
    $region11: #{tpu_custom_call.1} parent=1 // pred_check_branch
      %36 = sbr.rel (0) target = $region13
    $region12: #{tpu_custom_call.1} parent=1 // pred_region
      %37 = dma.done [#allocation3], 256
    $region13: #{tpu_custom_call.1} parent=1 // pred_fallthru
      _
    // Predicated region
    $region14: #{tpu_custom_call.1} parent=1 // pred_check
      _
    $region15: #{tpu_custom_call.1} parent=1 // pred_check_branch
      %39 = sbr.rel (0) target = $region17
    $region16: #{tpu_custom_call.1} parent=1 // pred_region
      %40 = dma.done [#allocation6], 32
    $region17: #{tpu_custom_call.1} parent=1 // pred_fallthru
      _
    %v41 = vld [vmem:[#allocation2] sm:$0xff]
    %v42 = vld [vmem:[#allocation2 + $0x8] sm:$0xff]
    %vm43 = vcmask 261120
    %44 = vst.msk [vmem:[#allocation7] sm:$0xff] %vm43, %v41
    %45 = vst.msk [vmem:[#allocation7 + $0x8] sm:$0xff] %vm43, %v42
    %v46 = vld [vmem:[#allocation5] sm:$0x3]
    %vm47 = vcmask 254976
    %48 = vst.msk [vmem:[#allocation8] sm:$0x3] %vm47, %v46
    // Predicated region
    $region18: #{tpu_custom_call.1} parent=1 // pred_check
      _
    $region19: #{tpu_custom_call.1} parent=1 // pred_check_branch
      %50 = sbr.rel (0) target = $region21
    $region20: #{tpu_custom_call.1} parent=1 // pred_region
      %s52 = ssub.s32 256, 256
      %53 = vsyncadd [#allocation4], %s52
      %s54 = sshll.u32 [#allocation7], 4
      %s55 = int_to_ptr.vmem [resolvable:$true] %s54
      %60 = dma.vmem_to_hbm [thread:$0]  %s55, 256, %s2, [#allocation4], 128, 128, 8
    $region21: #{tpu_custom_call.1} parent=1 // pred_fallthru
      _
    // Predicated region
    $region22: #{tpu_custom_call.1} parent=1 // pred_check
      _
    $region23: #{tpu_custom_call.1} parent=1 // pred_check_branch
      %62 = sbr.rel (0) target = $region25
    $region24: #{tpu_custom_call.1} parent=1 // pred_region
      %s64 = ssub.s32 32, 32
      %65 = vsyncadd [#allocation9], %s64
      %s67 = sshll.u32 [#allocation8], 4
      %s68 = int_to_ptr.vmem [resolvable:$true] %s67
      %70 = dma.vmem_to_hbm [thread:$0]  %s68, 32, %s3, [#allocation9]
    $region25: #{tpu_custom_call.1} parent=1 // pred_fallthru
      _
    // Predicated region
    $region26: #{tpu_custom_call.1} parent=1 // pred_check
      _
    $region27: #{tpu_custom_call.1} parent=1 // pred_check_branch
      %72 = sbr.rel (0) target = $region29
    $region28: #{tpu_custom_call.1} parent=1 // pred_region
      %73 = dma.done [#allocation4], 256
    $region29: #{tpu_custom_call.1} parent=1 // pred_fallthru
      _
    // Predicated region
    $region30: #{tpu_custom_call.1} parent=1 // pred_check
      _
    $region31: #{tpu_custom_call.1} parent=1 // pred_check_branch
      %75 = sbr.rel (0) target = $region33
    $region32: #{tpu_custom_call.1} parent=1 // pred_region
      %76 = dma.done [#allocation9], 32
    $region33: #{tpu_custom_call.1} parent=1 // pred_fallthru
      _
    %77 = vsyncpa [#allocation3], 1
    %78 = vsyncpa [#allocation6], 1
    %79 = vsyncpa [#allocation4], 1
    %80 = vsyncpa [#allocation9], 1

</llo_original>
